<compile_context>
chip_gen: v5e
topology: v5e:2x2
jax: 0.10.0
libtpu: 0.0.40
codegen_flags: <defaults>
</compile_context>

<pallas_src>
import functools
import math

import jax
import jax.numpy as jnp
from jax.experimental import pallas as pl
from jax.experimental.pallas import tpu as pltpu


# ----------------------------------------------------------------------------
# Parameter setup (glue, plain JAX): sinusoidal table exactly like __init__.
# Stored 2-D (max_len, d_model); the batch broadcast happens in-kernel.
# ----------------------------------------------------------------------------
def make_positional_encoding(max_len: int, d_model: int,
                             dtype=jnp.float32) -> jax.Array:
    position = jnp.arange(0, max_len, dtype=jnp.float32)[:, None]          # (L, 1)
    div_term = jnp.exp(
        jnp.arange(0, d_model, 2, dtype=jnp.float32)
        * (-math.log(10000.0) / d_model)
    )                                                                       # (D/2,)
    pe = jnp.zeros((max_len, d_model), dtype=jnp.float32)
    pe = pe.at[:, 0::2].set(jnp.sin(position * div_term))
    pe = pe.at[:, 1::2].set(jnp.cos(position * div_term))
    return pe.astype(dtype)                                                 # (L, D)


# ----------------------------------------------------------------------------
# Kernels
# ----------------------------------------------------------------------------
def _pe_add_kernel_blocked(x_ref, pe_ref, o_ref):
    # Path A: x_ref / o_ref / pe_ref are all (tile_s, D). Single wide add;
    # pe's block index is constant along the batch grid axis (no re-DMA).
    o_ref[...] = x_ref[...] + pe_ref[...]


def _pe_add_kernel_sliced(x_ref, pe_ref, o_ref, *, batch: int, d_model: int):
    # Path B: x_ref / o_ref are (tile_s, B*D); pe_ref is (tile_s, D).
    # Static per-batch slice adds -- no materialized (tile_s, B*D) temp.
    pe = pe_ref[...]
    for b in range(batch):
        sl = slice(b * d_model, (b + 1) * d_model)
        o_ref[:, sl] = x_ref[:, sl] + pe


# ----------------------------------------------------------------------------
# Tiling helpers
# ----------------------------------------------------------------------------
_TARGET_X_TILE_BYTES = 4 * 1024 * 1024     # ~4 MiB of x per grid step
_VMEM_CAP_BYTES = 48 * 1024 * 1024         # stay under v7x's 64 MiB physical


def _sublane(dtype) -> int:
    # Sublane packing: 8 rows for 32-bit, 16 for 16-bit, 32 for 8-bit dtypes.
    return max(8, 32 // jnp.dtype(dtype).itemsize)


def _round_up(v: int, m: int) -> int:
    return (v + m - 1) // m * m


def _pick_tile_s(seq_len: int, row_bytes: int, sub: int,
                 want_multi_step: bool) -> int:
    t = (_TARGET_X_TILE_BYTES // max(row_bytes, 1)) // sub * sub
    t = max(t, sub)
    if want_multi_step and t >= seq_len and seq_len > sub:
        # Split the seq axis into >= 2 grid steps so v7x's two TensorCores can
        # both work on the "parallel" axis (ragged last block is fine).
        t = _round_up(pl.cdiv(seq_len, 2), sub)
    if t >= seq_len:
        return seq_len         # full seq dim: always a legal block shape
    return t                   # multiple of `sub`; ragged last block handled


# ----------------------------------------------------------------------------
# Wrapper
# ----------------------------------------------------------------------------
def positional_encoding_forward(x: jax.Array, pe: jax.Array,
                                *, in_place: bool = False) -> jax.Array:
    """x: (S, B, D); pe: (max_len, D) sinusoidal table. Returns x + pe[:S]."""
    S, B, D = x.shape
    max_len, d_model = pe.shape
    assert d_model == D, f"d_model mismatch: pe has {d_model}, x has {D}"
    assert S <= max_len, f"sequence length {S} exceeds max_len {max_len}"

    pe = pe.astype(x.dtype)            # one-time cast; halves pe DMA for bf16
    itemsize = jnp.dtype(x.dtype).itemsize
    sub = _sublane(x.dtype)

    # Flattening (S, B, D) -> (S, B*D) is a contiguous (free) reshape.
    x_flat = x.reshape(S, B * D)

    if D % 128 == 0:
        # ---- Path A: per-(seq, batch) blocks, no broadcast work in-kernel ----
        row_bytes = D * itemsize
        tile_s = _pick_tile_s(S, row_bytes, sub, want_multi_step=(B == 1))
        grid = (pl.cdiv(S, tile_s), B)
        # Double-buffered x-tile + out-tile + pe-tile, all (tile_s, D).
        footprint = 2 * 3 * tile_s * D * itemsize
        vmem_limit = int(min(max(footprint + (2 << 20), 16 << 20),
                             _VMEM_CAP_BYTES))

        out_flat = pl.pallas_call(
            _pe_add_kernel_blocked,
            out_shape=jax.ShapeDtypeStruct((S, B * D), x.dtype),
            grid=grid,
            in_specs=[
                pl.BlockSpec((tile_s, D), lambda i, b: (i, b)),
                # pe block index is constant in b -> fetched once per seq tile.
                pl.BlockSpec((tile_s, D), lambda i, b: (i, 0)),
            ],
            out_specs=pl.BlockSpec((tile_s, D), lambda i, b: (i, b)),
            compiler_params=pltpu.CompilerParams(
                dimension_semantics=("parallel", "parallel"),
                vmem_limit_bytes=vmem_limit,
            ),
            # Pure in-place add: only pays off when the caller donates x,
            # otherwise XLA inserts a protective copy -> opt-in.
            input_output_aliases={0: 0} if in_place else {},
        )(x_flat, pe)
        return out_flat.reshape(S, B, D)

    # ---- Path B: flattened rows, static per-batch slice adds ----
    row_bytes = B * D * itemsize
    tile_s = _pick_tile_s(S, row_bytes, sub, want_multi_step=True)

    def _footprint(ts: int) -> int:
        # double-buffered: x-tile + out-tile (B*D wide) + pe-tile (D wide)
        return 2 * (2 * ts * B * D + ts * D) * itemsize

    footprint = _footprint(tile_s)
    while footprint > _VMEM_CAP_BYTES - (4 << 20) and tile_s > sub:
        tile_s = max((tile_s // 2) // sub * sub, sub)
        footprint = _footprint(tile_s)
    # TODO(synk): if even an 8-row tile overflows VMEM (B*D extremely large
    # with D % 128 != 0), a lane-axis grid split would be needed.

    grid = (pl.cdiv(S, tile_s),)
    vmem_limit = int(min(max(footprint + (2 << 20), 16 << 20), _VMEM_CAP_BYTES))
    kernel = functools.partial(_pe_add_kernel_sliced, batch=B, d_model=D)

    out_flat = pl.pallas_call(
        kernel,
        out_shape=jax.ShapeDtypeStruct((S, B * D), x.dtype),
        grid=grid,
        in_specs=[
            pl.BlockSpec((tile_s, B * D), lambda i: (i, 0)),
            # Full pe table passed in; only the first ~S rows are touched.
            pl.BlockSpec((tile_s, D), lambda i: (i, 0)),
        ],
        out_specs=pl.BlockSpec((tile_s, B * D), lambda i: (i, 0)),
        compiler_params=pltpu.CompilerParams(
            dimension_semantics=("parallel",),
            vmem_limit_bytes=vmem_limit,
        ),
        input_output_aliases={0: 0} if in_place else {},
    )(x_flat, pe)

    # nn.Dropout(p=0.1) in eval mode is the identity.
    return out_flat.reshape(S, B, D)


# ----------------------------------------------------------------------------
# Demo / correctness check
# ----------------------------------------------------------------------------
if __name__ == "__main__":
    MAX_LEN = 5000
    key = jax.random.PRNGKey(0)

    # Case 1: d_model not a multiple of 128 -> sliced path (matches module demo).
    S, B, D = 8, 2, 32
    x = jax.random.normal(key, (S, B, D), dtype=jnp.float32)
    pe = make_positional_encoding(MAX_LEN, D)
    y = jax.block_until_ready(positional_encoding_forward(x, pe))
    y_ref = x + pe[:S][:, None, :]
    assert y.shape == (S, B, D)
    assert jnp.allclose(y, y_ref, atol=1e-6, rtol=1e-6)

    # Case 2: d_model multiple of 128 -> blocked (n_s, B) path.
    S2, B2, D2 = 16, 2, 128
    k2 = jax.random.PRNGKey(1)
    x2 = jax.random.normal(k2, (S2, B2, D2), dtype=jnp.float32)
    pe2 = make_positional_encoding(MAX_LEN, D2)
    y2 = jax.block_until_ready(positional_encoding_forward(x2, pe2))
    y2_ref = x2 + pe2[:S2][:, None, :]
    assert y2.shape == (S2, B2, D2)
    assert jnp.allclose(y2, y2_ref, atol=1e-6, rtol=1e-6)

    print("KERNEL_OK")
</pallas_src>

<mosaic_0001>
module attributes {stable_mosaic.version = 11 : i64} {
  func.func @_pe_add_kernel_sliced(%arg0: i32, %arg1: memref<8x64xf32, #tpu.memory_space<vmem>>, %arg2: memref<8x32xf32, #tpu.memory_space<vmem>>, %arg3: memref<8x64xf32, #tpu.memory_space<vmem>>) attributes {dimension_semantics = [#tpu.dimension_semantics<parallel>], iteration_bounds = array<i64: 1>, scalar_prefetch = 0 : i64, scratch_operands = 0 : i64, tpu.core_type = #tpu.core_type<tc>, window_params = [{transform_indices = @transform_0, window_bounds = array<i64: 8, 64>}, {transform_indices = @transform_1, window_bounds = array<i64: 8, 32>}, {transform_indices = @transform_2, window_bounds = array<i64: 8, 64>}]} {
    %c0 = arith.constant 0 : index
    %c0_0 = arith.constant 0 : index
    %0 = vector.load %arg2[%c0, %c0_0] : memref<8x32xf32, #tpu.memory_space<vmem>>, vector<8x32xf32>
    %c0_1 = arith.constant 0 : index
    %c0_2 = arith.constant 0 : index
    %1 = vector.load %arg1[%c0_1, %c0_2] : memref<8x64xf32, #tpu.memory_space<vmem>>, vector<8x32xf32>
    %2 = arith.addf %1, %0 : vector<8x32xf32>
    %c0_3 = arith.constant 0 : index
    %c0_4 = arith.constant 0 : index
    %3 = vector.load %arg3[%c0_3, %c0_4] : memref<8x64xf32, #tpu.memory_space<vmem>>, vector<8x32xf32>
    tpu.vector_store %arg3[%c0_3, %c0_4], %2 {strides = array<i32>} : memref<8x64xf32, #tpu.memory_space<vmem>>, vector<8x32xf32>,
    %c0_5 = arith.constant 0 : index
    %c32 = arith.constant 32 : index
    %4 = vector.load %arg1[%c0_5, %c32] : memref<8x64xf32, #tpu.memory_space<vmem>>, vector<8x32xf32>
    %5 = arith.addf %4, %0 : vector<8x32xf32>
    %c0_6 = arith.constant 0 : index
    %c32_7 = arith.constant 32 : index
    %6 = vector.load %arg3[%c0_6, %c32_7] : memref<8x64xf32, #tpu.memory_space<vmem>>, vector<8x32xf32>
    tpu.vector_store %arg3[%c0_6, %c32_7], %5 {strides = array<i32>} : memref<8x64xf32, #tpu.memory_space<vmem>>, vector<8x32xf32>,
    return
  }
  func.func @transform_0(%arg0: i32) -> (i32, i32) {
    %c0_i32 = arith.constant 0 : i32
    %c0_i32_0 = arith.constant 0 : i32
    return %arg0, %c0_i32 : i32, i32
  }
  func.func @transform_1(%arg0: i32) -> (i32, i32) {
    %c0_i32 = arith.constant 0 : i32
    %c0_i32_0 = arith.constant 0 : i32
    return %arg0, %c0_i32 : i32, i32
  }
  func.func @transform_2(%arg0: i32) -> (i32, i32) {
    %c0_i32 = arith.constant 0 : i32
    %c0_i32_0 = arith.constant 0 : i32
    return %arg0, %c0_i32 : i32, i32
  }
}

</mosaic_0001>

<llo_original>
// kernel: tpu_custom_call.1
$region0: #{tpu_custom_call.1}
  #allocation0 [shape = 'u32[]', space=smem, size = 0x4, offset = 0x4, fixed_abs, tag = 'smem constant byte address 0x4 - core index']
  #allocation1 [shape = 'u32[72,128]{1,0:T(1,128)}', space=vmem, size = 0x9000, scoped, tag = 'internal scratch']
  %s0 = inlined_call_operand.vmem [shape: f32[8,64], index: 0, kind: input, shape index: {}]
  %s1 = inlined_call_operand.vmem [shape: f32[5000,32], index: 1, kind: input, shape index: {}]
  %s2 = inlined_call_operand.hbm [shape: f32[8,64], index: 2, kind: output, shape index: {}]
  %s3 = sld [smem:[#allocation0]]
  $region18: #{tpu_custom_call.1} parent=0
    _
  %s5 = ssub.s32 1, %s3
  %s6 = scalar_select 0, %s5, %s3
  $region1: #{tpu_custom_call.1} parent=0
    #allocation2 [shape = 'u8[4096]{0}', space=vmem, size = 0x1000, scoped, tag = 'output window, operand 0, single buffered']
    #allocation3 [shape = 's32[1]{0}', space=sflag, size = 0x4, scoped, tag = 'scoped memory for tpu_custom_call.1']
    %7 = vsyncpa [#allocation3], 0
    // Predicated region
    $region2: #{tpu_custom_call.1} parent=1 // pred_check
      _
    $region3: #{tpu_custom_call.1} parent=1 // pred_check_branch
      %9 = sbr.rel (0) target = $region5
    $region4: #{tpu_custom_call.1} parent=1 // pred_region
      _
    $region5: #{tpu_custom_call.1} parent=1 // pred_fallthru
      _
    // Predicated region
    $region6: #{tpu_custom_call.1} parent=1 // pred_check
      _
    $region7: #{tpu_custom_call.1} parent=1 // pred_check_branch
      %11 = sbr.rel (0) target = $region9
    $region8: #{tpu_custom_call.1} parent=1 // pred_region
      _
    $region9: #{tpu_custom_call.1} parent=1 // pred_fallthru
      _
    %v12 = vld [vmem:[%s1] sm:$0xff]
    %v13 = vld [vmem:[%s0] sm:$0xff]
    %v14 = vadd.f32 %v13, %v12
    %vm15 = vcmask 261120
    %16 = vst.msk [vmem:[#allocation2] sm:$0xff] %vm15, %v14
    %v17 = vld [vmem:[%s0] sm:$0xff]
    %19 = vrot.lane.b32.xlu0 %v12, 32
    %v20 = vpop.permute.xlu0 %19
    %v22 = vadd.f32 %v17, %v20
    %vm23 = vcmask 523520
    %24 = vst.msk [vmem:[#allocation2] sm:$0xff] %vm23, %v22
    // Predicated region
    $region10: #{tpu_custom_call.1} parent=1 // pred_check
      _
    $region11: #{tpu_custom_call.1} parent=1 // pred_check_branch
      %26 = sbr.rel (0) target = $region13
    $region12: #{tpu_custom_call.1} parent=1 // pred_region
      %28 = vsyncadd [#allocation3], 0
      %s30 = sshll.u32 [#allocation2], 4
      %s31 = int_to_ptr.vmem [resolvable:$true] %s30
      %s32 = sshll.u32 %s2, 4
      %s33 = int_to_ptr.hbm [resolvable:$true] %s32
      %35 = dma.vmem_to_hbm [thread:$0]  %s31, 128, %s33, [#allocation3]
    $region13: #{tpu_custom_call.1} parent=1 // pred_fallthru
      _
    // Predicated region
    $region14: #{tpu_custom_call.1} parent=1 // pred_check
      _
    $region15: #{tpu_custom_call.1} parent=1 // pred_check_branch
      %37 = sbr.rel (0) target = $region17
    $region16: #{tpu_custom_call.1} parent=1 // pred_region
      %39 = dma.done [#allocation3], 128
    $region17: #{tpu_custom_call.1} parent=1 // pred_fallthru
      _
    %40 = vsyncpa [#allocation3], 1

</llo_original>
